<compile_context>
chip_gen: v7x
topology: tpu7x:2x2x1
jax: 0.10.0
libtpu: 0.0.40
codegen_flags: <defaults>
</compile_context>

<pallas_src>
import functools

import jax
import jax.numpy as jnp
import numpy as np
from jax.experimental import pallas as pl
from jax.experimental.pallas import tpu as pltpu


def _round_up(x, m):
    return (x + m - 1) // m * m


def _vmem_limit(tile_bytes, floor=32 << 20, cap=64 << 20):
    # Explicit scoped-VMEM budget (default is only 16-32 MiB); cap at 64 MiB so
    # the same limit is valid on v7x (64 MiB physical per TensorCore).
    return int(max(floor, min(cap, tile_bytes * 2)))


# ---------------------------------------------------------------------------
# Linear: y = x @ w + b, row-tiled over M = batch*seq.
# ---------------------------------------------------------------------------
def _linear_kernel(x_ref, w_ref, b_ref, o_ref):
    y = jnp.dot(x_ref[...], w_ref[...], preferred_element_type=jnp.float32)
    o_ref[...] = (y + b_ref[...]).astype(o_ref.dtype)


def linear_pallas(x2d, w, b, *, tm=256):
    """x2d: (M, d_in), w: (d_in, d_out), b: (d_out,) -> (M, d_out)."""
    M, d_in = x2d.shape
    d_out = w.shape[1]

    # Large MXU-friendly row tile, but never bigger than the (8-padded) M.
    tm = min(tm, _round_up(M, 8))
    M_pad = _round_up(M, tm)
    if M_pad != M:
        x2d = jnp.pad(x2d, ((0, M_pad - M), (0, 0)))

    b2d = b.reshape(1, d_out)
    itemsize = 4
    tile_bytes = (2 * tm * d_in + 2 * tm * d_out        # x / out tiles (dbl-buffered)
                  + 2 * d_in * d_out + 2 * d_out) * itemsize

    out = pl.pallas_call(
        _linear_kernel,
        out_shape=jax.ShapeDtypeStruct((M_pad, d_out), x2d.dtype),
        grid_spec=pltpu.PrefetchScalarGridSpec(
            num_scalar_prefetch=0,
            grid=(M_pad // tm,),
            in_specs=[
                pl.BlockSpec((tm, d_in), lambda i: (i, 0)),     # x tile
                pl.BlockSpec((d_in, d_out), lambda i: (0, 0)),  # w (resident)
                pl.BlockSpec((1, d_out), lambda i: (0, 0)),     # b
            ],
            out_specs=pl.BlockSpec((tm, d_out), lambda i: (i, 0)),
        ),
        compiler_params=pltpu.CompilerParams(
            dimension_semantics=("parallel",),
            vmem_limit_bytes=_vmem_limit(tile_bytes),
        ),
        cost_estimate=pl.CostEstimate(
            flops=2 * M_pad * d_in * d_out,
            transcendentals=0,
            bytes_accessed=(M_pad * d_in + d_in * d_out + d_out
                            + M_pad * d_out) * itemsize,
        ),
    )(x2d, w, b2d)
    return out[:M] if M_pad != M else out


# ---------------------------------------------------------------------------
# Scaled-dot-product attention, fused per (batch*head, q-tile).
# ---------------------------------------------------------------------------
def _attn_kernel(q_ref, k_ref, v_ref, m_ref, o_ref, w_ref, *, scale):
    q = q_ref[0]                                            # (tq, d_k)
    k = k_ref[0]                                            # (Sk, d_k)
    v = v_ref[0]                                            # (Sk, d_v)
    s = jnp.dot(q, k.T, preferred_element_type=jnp.float32) * scale
    s = jnp.where(m_ref[0] != 0.0, jnp.float32(-1e9), s)    # masked_fill
    m = jnp.max(s, axis=-1, keepdims=True)
    p = jnp.exp(s - m)
    wts = p / jnp.sum(p, axis=-1, keepdims=True)            # softmax(dim=-1)
    o = jnp.dot(wts.astype(v.dtype), v, preferred_element_type=jnp.float32)
    o_ref[0] = o.astype(o_ref.dtype)
    w_ref[0] = wts.astype(w_ref.dtype)


def attention_pallas(q_h, k_h, v_h, mask, n_heads, *, tq=256):
    """q_h/k_h/v_h: (B*H, S, d); mask: (B, Sq, Sk) float32 (nonzero = masked)."""
    BH, Sq, Dk = q_h.shape
    Sk = k_h.shape[1]
    Dv = v_h.shape[2]
    scale = float(1.0 / np.sqrt(Dk))

    # Tile the query axis; pad ragged Sq (padded rows are discarded afterwards).
    tq = min(tq, _round_up(Sq, 8))
    Sq_pad = _round_up(Sq, tq)
    if Sq_pad != Sq:
        q_h = jnp.pad(q_h, ((0, 0), (0, Sq_pad - Sq), (0, 0)))
        mask = jnp.pad(mask, ((0, 0), (0, Sq_pad - Sq), (0, 0)))

    itemsize = 4
    tile_bytes = 2 * (tq * Dk + Sk * Dk + Sk * Dv + tq * Sk   # inputs
                      + tq * Dv + tq * Sk) * itemsize         # outputs

    # NOTE: the module returns the full attention-weight tensor, so the
    # (tq, Sk) score block must be materialized (no flash-style streaming).
    out, wts = pl.pallas_call(
        functools.partial(_attn_kernel, scale=scale),
        out_shape=(jax.ShapeDtypeStruct((BH, Sq_pad, Dv), q_h.dtype),
                   jax.ShapeDtypeStruct((BH, Sq_pad, Sk), jnp.float32)),
        grid_spec=pltpu.PrefetchScalarGridSpec(
            num_scalar_prefetch=0,
            grid=(BH, Sq_pad // tq),
            in_specs=[
                pl.BlockSpec((1, tq, Dk), lambda bh, qi: (bh, qi, 0)),   # q tile
                pl.BlockSpec((1, Sk, Dk), lambda bh, qi: (bh, 0, 0)),    # k (full)
                pl.BlockSpec((1, Sk, Dv), lambda bh, qi: (bh, 0, 0)),    # v (full)
                # Mask is shared by all heads of one batch element.
                pl.BlockSpec((1, tq, Sk), lambda bh, qi: (bh // n_heads, qi, 0)),
            ],
            out_specs=[
                pl.BlockSpec((1, tq, Dv), lambda bh, qi: (bh, qi, 0)),
                pl.BlockSpec((1, tq, Sk), lambda bh, qi: (bh, qi, 0)),
            ],
        ),
        compiler_params=pltpu.CompilerParams(
            dimension_semantics=("parallel", "parallel"),
            vmem_limit_bytes=_vmem_limit(tile_bytes),
        ),
        cost_estimate=pl.CostEstimate(
            flops=2 * BH * Sq_pad * Sk * (Dk + Dv),
            transcendentals=BH * Sq_pad * Sk,
            bytes_accessed=(BH * (Sq_pad * Dk + Sk * Dk + Sk * Dv
                                  + Sq_pad * Dv + Sq_pad * Sk)
                            + (BH // n_heads) * Sq_pad * Sk) * itemsize,
        ),
    )(q_h, k_h, v_h, mask)

    if Sq_pad != Sq:
        out = out[:, :Sq]
        wts = wts[:, :Sq]
    return out, wts


# ---------------------------------------------------------------------------
# Full MultiHeadAttention forward.
# ---------------------------------------------------------------------------
def multi_head_attention(Q, K, V, attn_mask, params, n_heads, *, tm=256, tq=256):
    wq, bq, wk, bk, wv, bv, wo, bo = params
    B, Sq, d_model = Q.shape
    Sk = K.shape[1]
    d_k = d_model // n_heads

    q_p = linear_pallas(Q.reshape(B * Sq, d_model), wq, bq, tm=tm)
    k_p = linear_pallas(K.reshape(B * Sk, d_model), wk, bk, tm=tm)
    v_p = linear_pallas(V.reshape(B * Sk, d_model), wv, bv, tm=tm)

    def split_heads(x, S):
        return (x.reshape(B, S, n_heads, d_k)
                 .transpose(0, 2, 1, 3)
                 .reshape(B * n_heads, S, d_k))

    q_h = split_heads(q_p, Sq)
    k_h = split_heads(k_p, Sk)
    v_h = split_heads(v_p, Sk)

    mask_f = attn_mask.astype(jnp.float32)          # True -> 1.0 (masked)

    ctx, attn_w = attention_pallas(q_h, k_h, v_h, mask_f, n_heads, tq=tq)

    ctx = (ctx.reshape(B, n_heads, Sq, d_k)
              .transpose(0, 2, 1, 3)
              .reshape(B * Sq, n_heads * d_k))
    out = linear_pallas(ctx, wo, bo, tm=tm).reshape(B, Sq, d_model)
    attn_w = attn_w.reshape(B, n_heads, Sq, Sk)
    return out, attn_w


def init_params(key, d_model, dtype=jnp.float32):
    """nn.Linear-style uniform(-1/sqrt(fan_in), +) init. Weights stored (in, out)."""
    ks = jax.random.split(key, 8)
    bound = 1.0 / (d_model ** 0.5)

    def lin(kw, kb):
        w = jax.random.uniform(kw, (d_model, d_model), dtype, -bound, bound)
        b = jax.random.uniform(kb, (d_model,), dtype, -bound, bound)
        return w, b

    wq, bq = lin(ks[0], ks[1])
    wk, bk = lin(ks[2], ks[3])
    wv, bv = lin(ks[4], ks[5])
    wo, bo = lin(ks[6], ks[7])
    return (wq, bq, wk, bk, wv, bv, wo, bo)


def mha_reference(Q, K, V, attn_mask, params, n_heads):
    """Pure-JAX reference matching the PyTorch module's forward."""
    wq, bq, wk, bk, wv, bv, wo, bo = params
    B, Sq, d_model = Q.shape
    Sk = K.shape[1]
    d_k = d_model // n_heads
    scale = float(1.0 / np.sqrt(d_k))

    def proj(x, w, b, S):
        return (x @ w + b).reshape(B, S, n_heads, d_k).transpose(0, 2, 1, 3)

    q = proj(Q, wq, bq, Sq)
    k = proj(K, wk, bk, Sk)
    v = proj(V, wv, bv, Sk)
    s = jnp.einsum("bhqd,bhkd->bhqk", q, k) * scale
    s = jnp.where(attn_mask[:, None, :, :], -1e9, s)
    w = jax.nn.softmax(s, axis=-1)
    ctx = jnp.einsum("bhqk,bhkd->bhqd", w, v)
    ctx = ctx.transpose(0, 2, 1, 3).reshape(B, Sq, n_heads * d_k)
    out = ctx @ wo + bo
    return out, w


if __name__ == "__main__":
    batch, seq, d_model, n_heads = 2, 8, 32, 4

    key = jax.random.PRNGKey(0)
    kq, kk, kv, kp = jax.random.split(key, 4)
    Q = jax.random.normal(kq, (batch, seq, d_model), jnp.float32)
    K = jax.random.normal(kk, (batch, seq, d_model), jnp.float32)
    V = jax.random.normal(kv, (batch, seq, d_model), jnp.float32)
    # Causal mask: True = masked (PyTorch masked_fill semantics).
    causal = jnp.triu(jnp.ones((seq, seq), dtype=bool), k=1)
    attn_mask = jnp.broadcast_to(causal, (batch, seq, seq))

    params = init_params(kp, d_model)

    out, attn_w = multi_head_attention(Q, K, V, attn_mask, params, n_heads)
    out = jax.block_until_ready(out)
    attn_w = jax.block_until_ready(attn_w)

    ref_out, ref_w = mha_reference(Q, K, V, attn_mask, params, n_heads)
    assert out.shape == (batch, seq, d_model)
    assert attn_w.shape == (batch, n_heads, seq, seq)
    assert jnp.allclose(out, ref_out, atol=1e-4, rtol=1e-4)
    assert jnp.allclose(attn_w, ref_w, atol=1e-4, rtol=1e-4)

    print("KERNEL_OK")
</pallas_src>

<mosaic_0001>
module attributes {stable_mosaic.version = 11 : i64} {
  func.func @_linear_kernel(%arg0: i32, %arg1: memref<16x32xf32, #tpu.memory_space<vmem>>, %arg2: memref<32x32xf32, #tpu.memory_space<vmem>>, %arg3: memref<1x32xf32, #tpu.memory_space<vmem>>, %arg4: memref<16x32xf32, #tpu.memory_space<vmem>>) attributes {dimension_semantics = [#tpu.dimension_semantics<parallel>], iteration_bounds = array<i64: 1>, scalar_prefetch = 0 : i64, scratch_operands = 0 : i64, tpu.core_type = #tpu.core_type<tc>, window_params = [{transform_indices = @transform_0, window_bounds = array<i64: 16, 32>}, {pipeline_mode = #tpu.pipeline_mode<synchronous>, transform_indices = @transform_1, window_bounds = array<i64: 32, 32>}, {pipeline_mode = #tpu.pipeline_mode<synchronous>, transform_indices = @transform_2, window_bounds = array<i64: 1, 32>}, {transform_indices = @transform_3, window_bounds = array<i64: 16, 32>}]} {
    %c0 = arith.constant 0 : index
    %c0_0 = arith.constant 0 : index
    %0 = vector.load %arg1[%c0, %c0_0] : memref<16x32xf32, #tpu.memory_space<vmem>>, vector<16x32xf32>
    %c0_1 = arith.constant 0 : index
    %c0_2 = arith.constant 0 : index
    %1 = vector.load %arg2[%c0_1, %c0_2] : memref<32x32xf32, #tpu.memory_space<vmem>>, vector<32x32xf32>
    %cst = arith.constant dense<0.000000e+00> : vector<16x32xf32>
    %2 = tpu.matmul %0, %1, %cst {dimension_numbers = #tpu.dot_dimension_numbers<[1], [0], [0], [1], [0, 0, 1, 1], [], []>} : vector<16x32xf32>, vector<32x32xf32>, vector<16x32xf32> -> vector<16x32xf32>
    %c0_3 = arith.constant 0 : index
    %c0_4 = arith.constant 0 : index
    %3 = vector.load %arg3[%c0_3, %c0_4] : memref<1x32xf32, #tpu.memory_space<vmem>>, vector<1x32xf32>
    %4 = vector.broadcast %3 : vector<1x32xf32> to vector<16x32xf32>
    %5 = arith.addf %2, %4 : vector<16x32xf32>
    %c0_5 = arith.constant 0 : index
    %c0_6 = arith.constant 0 : index
    %6 = vector.load %arg4[%c0_5, %c0_6] : memref<16x32xf32, #tpu.memory_space<vmem>>, vector<16x32xf32>
    tpu.vector_store %arg4[%c0_5, %c0_6], %5 {strides = array<i32>} : memref<16x32xf32, #tpu.memory_space<vmem>>, vector<16x32xf32>,
    return
  }
  func.func @transform_0(%arg0: i32) -> (i32, i32) {
    %c0_i32 = arith.constant 0 : i32
    %c0_i32_0 = arith.constant 0 : i32
    return %arg0, %c0_i32 : i32, i32
  }
  func.func @transform_1(%arg0: i32) -> (i32, i32) {
    %c0_i32 = arith.constant 0 : i32
    %c0_i32_0 = arith.constant 0 : i32
    %c0_i32_1 = arith.constant 0 : i32
    return %c0_i32, %c0_i32_0 : i32, i32
  }
  func.func @transform_2(%arg0: i32) -> (i32, i32) {
    %c0_i32 = arith.constant 0 : i32
    %c0_i32_0 = arith.constant 0 : i32
    %c0_i32_1 = arith.constant 0 : i32
    return %c0_i32, %c0_i32_0 : i32, i32
  }
  func.func @transform_3(%arg0: i32) -> (i32, i32) {
    %c0_i32 = arith.constant 0 : i32
    %c0_i32_0 = arith.constant 0 : i32
    return %arg0, %c0_i32 : i32, i32
  }
}

</mosaic_0001>

<llo_original>
// kernel: tpu_custom_call.1
$region0: #{tpu_custom_call.1}
  #allocation0 [shape = 'u32[]', space=smem, size = 0x4, offset = 0x4, fixed_abs, tag = 'smem constant byte address 0x4 - core index']
  #allocation1 [shape = 'u32[144,128]{1,0:T(1,128)}', space=vmem, size = 0x12000, scoped, tag = 'internal scratch']
  %s0 = inlined_call_operand.hbm [shape: f32[16,32], index: 0, kind: input, shape index: {}]
  %s1 = inlined_call_operand.hbm [shape: f32[32,32], index: 1, kind: input, shape index: {}]
  %s2 = inlined_call_operand.vmem [shape: f32[1,32], index: 2, kind: input, shape index: {}]
  %s3 = inlined_call_operand.hbm [shape: f32[16,32], index: 3, kind: output, shape index: {}]
  %s4 = sld [smem:[#allocation0]]
  $region30: #{tpu_custom_call.1} parent=0
    _
  %s6 = ssub.s32 1, %s4
  %s7 = scalar_select 0, %s6, %s4
  $region1: #{tpu_custom_call.1} parent=0
    #allocation2 [shape = 'u8[8192]{0}', space=vmem, size = 0x2000, scoped, tag = 'input window, operand 0, single buffered']
    #allocation3 [shape = 's32[1]{0}', space=sflag, size = 0x4, scoped, tag = 'scoped memory for tpu_custom_call.1']
    #allocation4 [shape = 's32[1]{0}', space=sflag, size = 0x4, scoped, tag = 'scoped memory for tpu_custom_call.1']
    #allocation5 [shape = 'u8[16384]{0}', space=vmem, size = 0x4000, scoped, tag = 'input window, operand 1, single buffered']
    #allocation6 [shape = 's32[1]{0}', space=sflag, size = 0x4, scoped, tag = 'scoped memory for tpu_custom_call.1']
    #allocation7 [shape = 'u8[8192]{0}', space=vmem, size = 0x2000, scoped, tag = 'output window, operand 0, single buffered']
    %8 = vsyncpa [#allocation3], 0
    %9 = vsyncpa [#allocation6], 0
    %10 = vsyncpa [#allocation4], 0
    // Predicated region
    $region2: #{tpu_custom_call.1} parent=1 // pred_check
      _
    $region3: #{tpu_custom_call.1} parent=1 // pred_check_branch
      %12 = sbr.rel (0) target = $region5
    $region4: #{tpu_custom_call.1} parent=1 // pred_region
      %s14 = ssub.s32 256, 256
      %15 = vsyncadd [#allocation3], %s14
      %s16 = sshll.u32 [#allocation2], 4
      %s17 = int_to_ptr.vmem [resolvable:$true] %s16
      %22 = dma.hbm_to_vmem [thread:$0]  %s0, 256, %s17, [#allocation3], 128, 128, 8
    $region5: #{tpu_custom_call.1} parent=1 // pred_fallthru
      _
    // Predicated region
    $region6: #{tpu_custom_call.1} parent=1 // pred_check
      _
    $region7: #{tpu_custom_call.1} parent=1 // pred_check_branch
      %24 = sbr.rel (0) target = $region9
    $region8: #{tpu_custom_call.1} parent=1 // pred_region
      %s26 = ssub.s32 512, 512
      %27 = vsyncadd [#allocation6], %s26
      %s28 = sshll.u32 [#allocation5], 4
      %s29 = int_to_ptr.vmem [resolvable:$true] %s28
      %34 = dma.hbm_to_vmem [thread:$0]  %s1, 512, %s29, [#allocation6], 128, 128, 8
    $region9: #{tpu_custom_call.1} parent=1 // pred_fallthru
      _
    // Predicated region
    $region10: #{tpu_custom_call.1} parent=1 // pred_check
      _
    $region11: #{tpu_custom_call.1} parent=1 // pred_check_branch
      %36 = sbr.rel (0) target = $region13
    $region12: #{tpu_custom_call.1} parent=1 // pred_region
      _
    $region13: #{tpu_custom_call.1} parent=1 // pred_fallthru
      _
    // Predicated region
    $region14: #{tpu_custom_call.1} parent=1 // pred_check
      _
    $region15: #{tpu_custom_call.1} parent=1 // pred_check_branch
      %38 = sbr.rel (0) target = $region17
    $region16: #{tpu_custom_call.1} parent=1 // pred_region
      %39 = dma.done [#allocation3], 256
    $region17: #{tpu_custom_call.1} parent=1 // pred_fallthru
      _
    // Predicated region
    $region18: #{tpu_custom_call.1} parent=1 // pred_check
      _
    $region19: #{tpu_custom_call.1} parent=1 // pred_check_branch
      %41 = sbr.rel (0) target = $region21
    $region20: #{tpu_custom_call.1} parent=1 // pred_region
      %42 = dma.done [#allocation6], 512
    $region21: #{tpu_custom_call.1} parent=1 // pred_fallthru
      _
    %v43 = vld [vmem:[#allocation2] sm:$0xff]
    %v44 = vld [vmem:[#allocation2 + $0x8] sm:$0xff]
    %v45 = vld [vmem:[#allocation5] sm:$0xff]
    %v46 = vld [vmem:[#allocation5 + $0x8] sm:$0xff]
    %v47 = vld [vmem:[#allocation5 + $0x10] sm:$0xff]
    %v48 = vld [vmem:[#allocation5 + $0x18] sm:$0xff]
    %v49 = vld [vmem:[%s2] sm:$0x1]
    %v51 = vlaneseq
    %v52 = vshrl.u32 %v51, 7
    %v53 = vsub.s32 0, %v52
    %v54 = vrot.slane %v49, %v53
    %vm56 = vcmask 261120
    %v58 = vsel %vm56, %v43, 0
    %v61 = vsel %vm56, %v44, 0
    %63 = vmatprep.subr.mxu0 0.0
    %64 = vmatpush1.msra.mxu0 %v45
    %65 = vmatprep.subr.mxu0 0.0
    %66 = vmatpush1.msra.mxu0 %v46
    %67 = vmatprep.subr.mxu0 0.0
    %68 = vmatpush1.msra.mxu0 %v47
    %69 = vmatprep.subr.mxu0 0.0
    %70 = vmatpush1.msra.mxu0 %v48
    %71 = vmatprep.subr.mxu0 0.0
    %72 = vmatpush1.msra.mxu0 0.0
    %73 = vmatprep.subr.mxu0 0.0
    %74 = vmatpush1.msra.mxu0 0.0
    %75 = vmatprep.subr.mxu0 0.0
    %76 = vmatpush1.msra.mxu0 0.0
    %77 = vmatprep.subr.mxu0 0.0
    %78 = vmatpush1.msra.mxu0 0.0
    %79 = vmatprep.subr.mxu0 0.0
    %80 = vmatpush1.msra.mxu0 0.0
    %81 = vmatprep.subr.mxu0 0.0
    %82 = vmatpush1.msra.mxu0 0.0
    %83 = vmatprep.subr.mxu0 0.0
    %84 = vmatpush1.msra.mxu0 0.0
    %85 = vmatprep.subr.mxu0 0.0
    %86 = vmatpush1.msra.mxu0 0.0
    %87 = vmatprep.subr.mxu0 0.0
    %88 = vmatpush1.msra.mxu0 0.0
    %89 = vmatprep.subr.mxu0 0.0
    %90 = vmatpush1.msra.mxu0 0.0
    %91 = vmatprep.subr.mxu0 0.0
    %92 = vmatpush1.msra.mxu0 0.0
    %93 = vmatprep.subr.mxu0 0.0
    %94 = vmatpush1.msra.mxu0 0.0
    %95 = vmatprep.subr.mxu0 0.0
    %96 = vmatpush1.msra.mxu0 0.0
    %97 = vmatprep.subr.mxu0 0.0
    %98 = vmatpush1.msra.mxu0 0.0
    %99 = vmatprep.subr.mxu0 0.0
    %100 = vmatpush1.msra.mxu0 0.0
    %101 = vmatprep.subr.mxu0 0.0
    %102 = vmatpush1.msra.mxu0 0.0
    %103 = vmatprep.subr.mxu0 0.0
    %104 = vmatpush1.msra.mxu0 0.0
    %105 = vmatprep.subr.mxu0 0.0
    %106 = vmatpush1.msra.mxu0 0.0
    %107 = vmatprep.subr.mxu0 0.0
    %108 = vmatpush1.msra.mxu0 0.0
    %109 = vmatprep.subr.mxu0 0.0
    %110 = vmatpush1.msra.mxu0 0.0
    %111 = vmatprep.subr.mxu0 0.0
    %112 = vmatpush1.msra.mxu0 0.0
    %113 = vmatprep.subr.mxu0 0.0
    %114 = vmatpush1.msra.mxu0 0.0
    %115 = vmatprep.subr.mxu0 0.0
    %116 = vmatpush1.msra.mxu0 0.0
    %117 = vmatprep.subr.mxu0 0.0
    %118 = vmatpush1.msra.mxu0 0.0
    %119 = vmatprep.subr.mxu0 0.0
    %120 = vmatpush1.msra.mxu0 0.0
    %121 = vmatprep.subr.mxu0 0.0
    %122 = vmatpush1.msra.mxu0 0.0
    %123 = vmatprep.subr.mxu0 0.0
    %124 = vmatpush1.msra.mxu0 0.0
    %125 = vmatprep.subr.mxu0 0.0
    %126 = vmatpush1.msra.mxu0 0.0
    %127 = vmatprep.mubr.f32.mxu0 0.0
    %128 = vmatmul.mubr.f32.gmra.mrb[0].mxu0 %v58
    %v129 = vpop.f32.mrb[0].mxu0
    %v130 = vadd.f32 %v54, %v129
    %v131 = vpop.f32.mrb[0].mxu0
    %132 = vmatprep.mubr.f32.mxu0 0.0
    %133 = vmatmul.mubr.f32.gmra.mrb[0].mxu0 %v61
    %v134 = vpop.f32.mrb[0].mxu0
    %v135 = vadd.f32 %v54, %v134
    %v136 = vpop.f32.mrb[0].mxu0
    %137 = vdwg.mxu0
    %138 = vst.msk [vmem:[#allocation7] sm:$0xff] %vm56, %v130
    %139 = vst.msk [vmem:[#allocation7 + $0x8] sm:$0xff] %vm56, %v135
    // Predicated region
    $region22: #{tpu_custom_call.1} parent=1 // pred_check
      _
    $region23: #{tpu_custom_call.1} parent=1 // pred_check_branch
      %141 = sbr.rel (0) target = $region25
    $region24: #{tpu_custom_call.1} parent=1 // pred_region
      %s143 = ssub.s32 256, 256
      %144 = vsyncadd [#allocation4], %s143
      %s145 = sshll.u32 [#allocation7], 4
      %s146 = int_to_ptr.vmem [resolvable:$true] %s145
      %151 = dma.vmem_to_hbm [thread:$0]  %s146, 256, %s3, [#allocation4], 128, 128, 8
    $region25: #{tpu_custom_call.1} parent=1 // pred_fallthru
      _
    // Predicated region
    $region26: #{tpu_custom_call.1} parent=1 // pred_check
      _
    $region27: #{tpu_custom_call.1} parent=1 // pred_check_branch
      %153 = sbr.rel (0) target = $region29
    $region28: #{tpu_custom_call.1} parent=1 // pred_region
      %154 = dma.done [#allocation4], 256
    $region29: #{tpu_custom_call.1} parent=1 // pred_fallthru
      _
    %155 = vsyncpa [#allocation3], 1
    %156 = vsyncpa [#allocation6], 1
    %157 = vsyncpa [#allocation4], 1

</llo_original>
